<compile_context>
chip_gen: v7x
topology: tpu7x:2x2x1
jax: 0.10.0
libtpu: 0.0.40
codegen_flags: <defaults>
</compile_context>

<pallas_src>
import jax
import jax.numpy as jnp
from jax.experimental import pallas as pl
from jax.experimental.pallas import tpu as pltpu

NUM_DIGITS = 14
NUM_HIDDEN = 100
NUM_CLASSES = 4

HP = 128   # lane-dense padded hidden dim (VMEM)
CP = 128   # lane-dense padded class dim (VMEM temp only; HBM output is 4 wide)


def _mlp_kernel(x_ref, w1_ref, b1_ref, w2_ref, b2_ref, o_ref):
    # x:  (TB, 14)   f32      w1: (14, 128)  f32     b1: (1, 128) f32
    # w2: (128, 128) f32      b2: (1, 128)   f32     o:  (TB, 4)  f32
    x = x_ref[...]
    h = jnp.dot(x, w1_ref[...], preferred_element_type=jnp.float32)   # (TB, 128)
    h = jnp.maximum(h + b1_ref[...], 0.0)                             # bias + ReLU
    out = jnp.dot(h, w2_ref[...], preferred_element_type=jnp.float32) # (TB, 128)
    out = out + b2_ref[...]
    # Only the first NUM_CLASSES lanes are meaningful; store just those.
    o_ref[...] = out[:, :NUM_CLASSES].astype(o_ref.dtype)


def pad_params(w1, b1, w2, b2):
    """Zero-pad params to lane-dense shapes ONCE (hoisted out of per-call path).
    Weights are stored (in_features, out_features), i.e. PyTorch weight.T."""
    w1p = jnp.zeros((NUM_DIGITS, HP), jnp.float32).at[:, :NUM_HIDDEN].set(
        w1.astype(jnp.float32))
    b1p = jnp.zeros((1, HP), jnp.float32).at[:, :NUM_HIDDEN].set(
        b1.reshape(1, NUM_HIDDEN).astype(jnp.float32))
    w2p = jnp.zeros((HP, CP), jnp.float32).at[:NUM_HIDDEN, :NUM_CLASSES].set(
        w2.astype(jnp.float32))
    b2p = jnp.zeros((1, CP), jnp.float32).at[:, :NUM_CLASSES].set(
        b2.reshape(1, NUM_CLASSES).astype(jnp.float32))
    return w1p, b1p, w2p, b2p


def _choose_tb(batch, tb_max):
    # >=2 grid steps when the batch allows it (so both v7x TensorCores work),
    # tile rows a multiple of 16, capped at tb_max.
    target = -(-batch // 2) if batch >= 32 else batch
    tb = -(-target // 16) * 16
    return max(16, min(tb_max, tb))


def fizz_buzz_forward(x, padded_params, *, tb_max=2048):
    """x: (B, NUM_DIGITS) float; padded_params from pad_params()."""
    w1p, b1p, w2p, b2p = padded_params
    x = x.astype(jnp.float32)
    B = x.shape[0]
    TB = _choose_tb(B, tb_max)
    grid = (pl.cdiv(B, TB),)   # ragged last block: reads padded, writes masked

    return pl.pallas_call(
        _mlp_kernel,
        out_shape=jax.ShapeDtypeStruct((B, NUM_CLASSES), jnp.float32),
        grid=grid,
        in_specs=[
            pl.BlockSpec((TB, NUM_DIGITS), lambda i: (i, 0)),   # x tile (streamed)
            pl.BlockSpec((NUM_DIGITS, HP), lambda i: (0, 0)),   # w1 (VMEM-resident)
            pl.BlockSpec((1, HP),          lambda i: (0, 0)),   # b1 (VMEM-resident)
            pl.BlockSpec((HP, CP),         lambda i: (0, 0)),   # w2 (VMEM-resident)
            pl.BlockSpec((1, CP),          lambda i: (0, 0)),   # b2 (VMEM-resident)
        ],
        out_specs=pl.BlockSpec((TB, NUM_CLASSES), lambda i: (i, 0)),  # (B, 4) out
        compiler_params=pltpu.CompilerParams(
            dimension_semantics=("parallel",)),                 # megacore on v7x
    )(x, w1p, b1p, w2p, b2p)


def init_params(key):
    """nn.Linear-style U(-1/sqrt(fan_in), 1/sqrt(fan_in)) init."""
    k1, k2, k3, k4 = jax.random.split(key, 4)
    bound1 = 1.0 / jnp.sqrt(jnp.float32(NUM_DIGITS))
    bound2 = 1.0 / jnp.sqrt(jnp.float32(NUM_HIDDEN))
    # stored as (in_features, out_features) == PyTorch weight transposed
    w1 = jax.random.uniform(k1, (NUM_DIGITS, NUM_HIDDEN), jnp.float32, -bound1, bound1)
    b1 = jax.random.uniform(k2, (NUM_HIDDEN,), jnp.float32, -bound1, bound1)
    w2 = jax.random.uniform(k3, (NUM_HIDDEN, NUM_CLASSES), jnp.float32, -bound2, bound2)
    b2 = jax.random.uniform(k4, (NUM_CLASSES,), jnp.float32, -bound2, bound2)
    return w1, b1, w2, b2


if __name__ == "__main__":
    key = jax.random.PRNGKey(0)
    k_params, _ = jax.random.split(key)
    w1, b1, w2, b2 = init_params(k_params)
    padded = pad_params(w1, b1, w2, b2)

    batch = 32
    # FizzBuzz-style binary-digit encodings of small integers
    nums = jnp.arange(1, batch + 1)
    x = ((nums[:, None] >> jnp.arange(NUM_DIGITS)[None, :]) & 1).astype(jnp.float32)

    out = jax.block_until_ready(fizz_buzz_forward(x, padded))

    # correctness check against a plain-JAX f32 reference (weights are f32 in
    # the kernel now, so this tracks the original fp32 PyTorch network)
    h_ref = jnp.maximum(jnp.dot(x, w1) + b1, 0.0)
    ref = jnp.dot(h_ref, w2) + b2

    assert out.shape == (batch, NUM_CLASSES)
    assert jnp.allclose(out, ref, atol=2e-2, rtol=2e-2), (
        float(jnp.max(jnp.abs(out - ref))))

    print("KERNEL_OK")
</pallas_src>

<mosaic_0001>
module attributes {stable_mosaic.version = 11 : i64} {
  func.func @_mlp_kernel(%arg0: i32, %arg1: memref<16x14xf32, #tpu.memory_space<vmem>>, %arg2: memref<14x128xf32, #tpu.memory_space<vmem>>, %arg3: memref<1x128xf32, #tpu.memory_space<vmem>>, %arg4: memref<128x128xf32, #tpu.memory_space<vmem>>, %arg5: memref<1x128xf32, #tpu.memory_space<vmem>>, %arg6: memref<16x4xf32, #tpu.memory_space<vmem>>) attributes {dimension_semantics = [#tpu.dimension_semantics<parallel>], iteration_bounds = array<i64: 2>, scalar_prefetch = 0 : i64, scratch_operands = 0 : i64, tpu.core_type = #tpu.core_type<tc>, window_params = [{transform_indices = @transform_0, window_bounds = array<i64: 16, 14>}, {pipeline_mode = #tpu.pipeline_mode<synchronous>, transform_indices = @transform_1, window_bounds = array<i64: 14, 128>}, {pipeline_mode = #tpu.pipeline_mode<synchronous>, transform_indices = @transform_2, window_bounds = array<i64: 1, 128>}, {pipeline_mode = #tpu.pipeline_mode<synchronous>, transform_indices = @transform_3, window_bounds = array<i64: 128, 128>}, {pipeline_mode = #tpu.pipeline_mode<synchronous>, transform_indices = @transform_4, window_bounds = array<i64: 1, 128>}, {transform_indices = @transform_5, window_bounds = array<i64: 16, 4>}]} {
    %c0 = arith.constant 0 : index
    %c0_0 = arith.constant 0 : index
    %0 = vector.load %arg1[%c0, %c0_0] : memref<16x14xf32, #tpu.memory_space<vmem>>, vector<16x14xf32>
    %c0_1 = arith.constant 0 : index
    %c0_2 = arith.constant 0 : index
    %1 = vector.load %arg2[%c0_1, %c0_2] : memref<14x128xf32, #tpu.memory_space<vmem>>, vector<14x128xf32>
    %cst = arith.constant dense<0.000000e+00> : vector<16x128xf32>
    %2 = tpu.matmul %0, %1, %cst {dimension_numbers = #tpu.dot_dimension_numbers<[1], [0], [0], [1], [0, 0, 1, 1], [], []>} : vector<16x14xf32>, vector<14x128xf32>, vector<16x128xf32> -> vector<16x128xf32>
    %c0_3 = arith.constant 0 : index
    %c0_4 = arith.constant 0 : index
    %3 = vector.load %arg3[%c0_3, %c0_4] : memref<1x128xf32, #tpu.memory_space<vmem>>, vector<1x128xf32>
    %4 = vector.broadcast %3 : vector<1x128xf32> to vector<16x128xf32>
    %5 = arith.addf %2, %4 : vector<16x128xf32>
    %cst_5 = arith.constant 0.000000e+00 : f32
    %6 = vector.broadcast %cst_5 : f32 to vector<16x128xf32>
    %7 = arith.maximumf %5, %6 : vector<16x128xf32>
    %c0_6 = arith.constant 0 : index
    %c0_7 = arith.constant 0 : index
    %8 = vector.load %arg4[%c0_6, %c0_7] : memref<128x128xf32, #tpu.memory_space<vmem>>, vector<128x128xf32>
    %cst_8 = arith.constant dense<0.000000e+00> : vector<16x128xf32>
    %9 = tpu.matmul %7, %8, %cst_8 {dimension_numbers = #tpu.dot_dimension_numbers<[1], [0], [0], [1], [0, 0, 1, 1], [], []>} : vector<16x128xf32>, vector<128x128xf32>, vector<16x128xf32> -> vector<16x128xf32>
    %c0_9 = arith.constant 0 : index
    %c0_10 = arith.constant 0 : index
    %10 = vector.load %arg5[%c0_9, %c0_10] : memref<1x128xf32, #tpu.memory_space<vmem>>, vector<1x128xf32>
    %11 = vector.broadcast %10 : vector<1x128xf32> to vector<16x128xf32>
    %12 = arith.addf %9, %11 : vector<16x128xf32>
    %13 = vector.extract_strided_slice %12 {offsets = [0, 0], sizes = [16, 4], strides = [1, 1]} : vector<16x128xf32> to vector<16x4xf32>
    %c0_11 = arith.constant 0 : index
    %c0_12 = arith.constant 0 : index
    %14 = vector.load %arg6[%c0_11, %c0_12] : memref<16x4xf32, #tpu.memory_space<vmem>>, vector<16x4xf32>
    tpu.vector_store %arg6[%c0_11, %c0_12], %13 {strides = array<i32>} : memref<16x4xf32, #tpu.memory_space<vmem>>, vector<16x4xf32>,
    return
  }
  func.func @transform_0(%arg0: i32) -> (i32, i32) {
    %c0_i32 = arith.constant 0 : i32
    %c0_i32_0 = arith.constant 0 : i32
    return %arg0, %c0_i32 : i32, i32
  }
  func.func @transform_1(%arg0: i32) -> (i32, i32) {
    %c0_i32 = arith.constant 0 : i32
    %c0_i32_0 = arith.constant 0 : i32
    %c0_i32_1 = arith.constant 0 : i32
    return %c0_i32, %c0_i32_0 : i32, i32
  }
  func.func @transform_2(%arg0: i32) -> (i32, i32) {
    %c0_i32 = arith.constant 0 : i32
    %c0_i32_0 = arith.constant 0 : i32
    %c0_i32_1 = arith.constant 0 : i32
    return %c0_i32, %c0_i32_0 : i32, i32
  }
  func.func @transform_3(%arg0: i32) -> (i32, i32) {
    %c0_i32 = arith.constant 0 : i32
    %c0_i32_0 = arith.constant 0 : i32
    %c0_i32_1 = arith.constant 0 : i32
    return %c0_i32, %c0_i32_0 : i32, i32
  }
  func.func @transform_4(%arg0: i32) -> (i32, i32) {
    %c0_i32 = arith.constant 0 : i32
    %c0_i32_0 = arith.constant 0 : i32
    %c0_i32_1 = arith.constant 0 : i32
    return %c0_i32, %c0_i32_0 : i32, i32
  }
  func.func @transform_5(%arg0: i32) -> (i32, i32) {
    %c0_i32 = arith.constant 0 : i32
    %c0_i32_0 = arith.constant 0 : i32
    return %arg0, %c0_i32 : i32, i32
  }
}

</mosaic_0001>

<llo_original>
// kernel: tpu_custom_call.1
$region0: #{tpu_custom_call.1}
  #allocation0 [shape = 'u32[]', space=smem, size = 0x4, offset = 0x4, fixed_abs, tag = 'smem constant byte address 0x4 - core index']
  #allocation1 [shape = 'u32[144,128]{1,0:T(1,128)}', space=vmem, size = 0x12000, scoped, tag = 'internal scratch']
  %s0 = inlined_call_operand.vmem [shape: f32[32,14], index: 0, kind: input, shape index: {}]
  %s1 = inlined_call_operand.vmem [shape: f32[14,128], index: 1, kind: input, shape index: {}]
  %s2 = inlined_call_operand.vmem [shape: f32[1,128], index: 2, kind: input, shape index: {}]
  %s3 = inlined_call_operand.hbm [shape: f32[128,128], index: 3, kind: input, shape index: {}]
  %s4 = inlined_call_operand.vmem [shape: f32[1,128], index: 4, kind: input, shape index: {}]
  %s5 = inlined_call_operand.vmem [shape: f32[32,4], index: 5, kind: output, shape index: {}]
  %s6 = sld [smem:[#allocation0]]
  $region57: #{tpu_custom_call.1} parent=0
    _
  %s8 = ssub.s32 1, %s6
  %s9 = scalar_select 0, %s8, %s6
  $region1: #{tpu_custom_call.1} parent=0
    #allocation2 [shape = 'u8[65536]{0}', space=vmem, size = 0x10000, scoped, tag = 'input window, operand 3, single buffered']
    #allocation3 [shape = 's32[2]{0}', space=sflag, size = 0x8, scoped, tag = 'scoped memory for tpu_custom_call.1']
    %10 = vsyncpa [#allocation3], 0
    loop: start=0, step=1, limit=4
    $region2: #{tpu_custom_call.1} parent=1 // loop_pre_header
      _
    $region3: #{tpu_custom_call.1} parent=1 // loop_header
      %s12 = sphi 0, %s16
      %p13 = scmp.ge.s32.totalorder %s12, 4
      %s22 = sphi 0, %s24
      %s25 = sphi 0, %s22
      %s26 = sphi 0, %s25
      %s42 = sphi 0, %s26
      %s46 = sphi 0, %s46
      %s48 = sphi 0, %s46
      %s49 = sphi 0, %s48
      %s63 = sphi 0, %s49
      %s67 = sphi 0, %s67
      %s69 = sphi 0, %s67
      %s70 = sphi 0, %s69
      %s84 = sphi 0, %s70
      %s88 = sphi 0, %s88
      %s90 = sphi 0, %s88
      %s91 = sphi 0, %s90
      %s105 = sphi 0, %s91
      %s109 = sphi 0, %s109
      %s111 = sphi 0, %s109
      %s112 = sphi 0, %s111
      %s126 = sphi 0, %s112
      %s132 = sphi 0, %s134
      %s135 = sphi 0, %s132
      %s136 = sphi 0, %s135
      %s152 = sphi 0, %s136
    $region4: #{tpu_custom_call.1} parent=1 // loop_header_branch
      %15 = sbr.rel (%p13) target = $region8
    $region5: #{tpu_custom_call.1} parent=1 // loop_body
      %s17 = ssub.s32 %s12, 1
      %s18 = ssub.s32 %s12, 2
      %s19 = sadd.s32 %s12, 1
      %s20 = ssub.s32 %s12, %s19
      %p21 = scmp.eq.s32.totalorder %s20, 0
      %s23 = sadd.s32 %s22, 1
      %s24 = scalar_select %p21, %s22, %s23
      %p27 = pneg %p21
      %p28 = scmp.eq.s32.totalorder %s12, 1
      %p29 = por %p27, %p28
      %p30 = scmp.ne.s32.totalorder %s22, %s25
      %p31 = scmp.eq.s32.totalorder %s12, 0
      %p32 = por %p30, %p31
      %p33 = scmp.ne.s32.totalorder %s22, %s25
      %p34 = scmp.eq.s32.totalorder %s17, 1
      %p35 = por %p33, %p34
      %p36 = scmp.ne.s32.totalorder %s25, %s26
      %p37 = scmp.eq.s32.totalorder %s17, 0
      %p38 = por %p36, %p37
      %p39 = scmp.ne.s32.totalorder %s25, %s26
      %p40 = scmp.eq.s32.totalorder %s18, 1
      %p41 = por %p39, %p40
      %p43 = scmp.ne.s32.totalorder %s26, %s42
      %p44 = scmp.eq.s32.totalorder %s18, 0
      %p45 = por %p43, %p44
      %s47 = sadd.s32 %s46, 1
      %p50 = scmp.eq.s32.totalorder %s12, 1
      %p51 = scmp.ne.s32.totalorder %s46, %s48
      %p52 = scmp.eq.s32.totalorder %s12, 0
      %p53 = por %p51, %p52
      %p54 = scmp.ne.s32.totalorder %s46, %s48
      %p55 = scmp.eq.s32.totalorder %s17, 1
      %p56 = por %p54, %p55
      %p57 = scmp.ne.s32.totalorder %s48, %s49
      %p58 = scmp.eq.s32.totalorder %s17, 0
      %p59 = por %p57, %p58
      %p60 = scmp.ne.s32.totalorder %s48, %s49
      %p61 = scmp.eq.s32.totalorder %s18, 1
      %p62 = por %p60, %p61
      %p64 = scmp.ne.s32.totalorder %s49, %s63
      %p65 = scmp.eq.s32.totalorder %s18, 0
      %p66 = por %p64, %p65
      %s68 = sadd.s32 %s67, 1
      %p71 = scmp.eq.s32.totalorder %s12, 1
      %p72 = scmp.ne.s32.totalorder %s67, %s69
      %p73 = scmp.eq.s32.totalorder %s12, 0
      %p74 = por %p72, %p73
      %p75 = scmp.ne.s32.totalorder %s67, %s69
      %p76 = scmp.eq.s32.totalorder %s17, 1
      %p77 = por %p75, %p76
      %p78 = scmp.ne.s32.totalorder %s69, %s70
      %p79 = scmp.eq.s32.totalorder %s17, 0
      %p80 = por %p78, %p79
      %p81 = scmp.ne.s32.totalorder %s69, %s70
      %p82 = scmp.eq.s32.totalorder %s18, 1
      %p83 = por %p81, %p82
      %p85 = scmp.ne.s32.totalorder %s70, %s84
      %p86 = scmp.eq.s32.totalorder %s18, 0
      %p87 = por %p85, %p86
      %s89 = sadd.s32 %s88, 1
      %p92 = scmp.eq.s32.totalorder %s12, 1
      %p93 = scmp.ne.s32.totalorder %s88, %s90
      %p94 = scmp.eq.s32.totalorder %s12, 0
      %p95 = por %p93, %p94
      %p96 = scmp.ne.s32.totalorder %s88, %s90
      %p97 = scmp.eq.s32.totalorder %s17, 1
      %p98 = por %p96, %p97
      %p99 = scmp.ne.s32.totalorder %s90, %s91
      %p100 = scmp.eq.s32.totalorder %s17, 0
      %p101 = por %p99, %p100
      %p102 = scmp.ne.s32.totalorder %s90, %s91
      %p103 = scmp.eq.s32.totalorder %s18, 1
      %p104 = por %p102, %p103
      %p106 = scmp.ne.s32.totalorder %s91, %s105
      %p107 = scmp.eq.s32.totalorder %s18, 0
      %p108 = por %p106, %p107
      %s110 = sadd.s32 %s109, 1
      %p113 = scmp.eq.s32.totalorder %s12, 1
      %p114 = scmp.ne.s32.totalorder %s109, %s111
      %p115 = scmp.eq.s32.totalorder %s12, 0
      %p116 = por %p114, %p115
      %p117 = scmp.ne.s32.totalorder %s109, %s111
      %p118 = scmp.eq.s32.totalorder %s17, 1
      %p119 = por %p117, %p118
      %p120 = scmp.ne.s32.totalorder %s111, %s112
      %p121 = scmp.eq.s32.totalorder %s17, 0
      %p122 = por %p120, %p121
      %p123 = scmp.ne.s32.totalorder %s111, %s112
      %p124 = scmp.eq.s32.totalorder %s18, 1
      %p125 = por %p123, %p124
      %p127 = scmp.ne.s32.totalorder %s112, %s126
      %p128 = scmp.eq.s32.totalorder %s18, 0
      %p129 = por %p127, %p128
      %s130 = ssub.s32 %s12, %s19
      %p131 = scmp.eq.s32.totalorder %s130, 0
      %s133 = sadd.s32 %s132, 1
      %s134 = scalar_select %p131, %s132, %s133
      %p137 = pneg %p131
      %p138 = scmp.eq.s32.totalorder %s12, 1
      %p139 = por %p137, %p138
      %p140 = scmp.ne.s32.totalorder %s132, %s135
      %p141 = scmp.eq.s32.totalorder %s12, 0
      %p142 = por %p140, %p141
      %p143 = scmp.ne.s32.totalorder %s132, %s135
      %p144 = scmp.eq.s32.totalorder %s17, 1
      %p145 = por %p143, %p144
      %p146 = scmp.ne.s32.totalorder %s135, %s136
      %p147 = scmp.eq.s32.totalorder %s17, 0
      %p148 = por %p146, %p147
      %p149 = scmp.ne.s32.totalorder %s135, %s136
      %p150 = scmp.eq.s32.totalorder %s18, 1
      %p151 = por %p149, %p150
      %p153 = scmp.ne.s32.totalorder %s136, %s152
      %p154 = scmp.eq.s32.totalorder %s18, 0
      %p155 = por %p153, %p154
      %p156 = scmp.le.s32.totalorder 1, %s12
      %p157 = scmp.lt.s32.totalorder %s12, 3
      %p158 = pnand %p156, %p157
      %p159 = pneg %p158
      // Predicated region
      $region9: #{tpu_custom_call.1} parent=5 // pred_check
        _
      $region10: #{tpu_custom_call.1} parent=5 // pred_check_branch
        %161 = sbr.rel (%p158) target = $region12
      $region11: #{tpu_custom_call.1} parent=5 // pred_region
        %s162 = ssub.s32 %s12, 1
        // Predicated region
        $region13: #{tpu_custom_call.1} parent=11 // pred_check
          %p163 = pneg %p59
        $region14: #{tpu_custom_call.1} parent=11 // pred_check_branch
          %165 = sbr.rel (%p163) target = $region16
        $region15: #{tpu_custom_call.1} parent=11 // pred_region
          _
        $region16: #{tpu_custom_call.1} parent=11 // pred_fallthru
          _
        // Predicated region
        $region17: #{tpu_custom_call.1} parent=11 // pred_check
          %p166 = pneg %p80
        $region18: #{tpu_custom_call.1} parent=11 // pred_check_branch
          %168 = sbr.rel (%p166) target = $region20
        $region19: #{tpu_custom_call.1} parent=11 // pred_region
          _
        $region20: #{tpu_custom_call.1} parent=11 // pred_fallthru
          _
        // Predicated region
        $region21: #{tpu_custom_call.1} parent=11 // pred_check
          %p169 = pneg %p101
        $region22: #{tpu_custom_call.1} parent=11 // pred_check_branch
          %171 = sbr.rel (%p169) target = $region24
        $region23: #{tpu_custom_call.1} parent=11 // pred_region
          %s173 = ssub.s32 2048, 2048
          %174 = vsyncadd [#allocation3], %s173
          %s175 = sshll.u32 [#allocation2], 4
          %s176 = int_to_ptr.vmem [resolvable:$true] %s175
          %181 = dma.hbm_to_vmem [thread:$0]  %s3, 2048, %s176, [#allocation3], 128, 128, 8
        $region24: #{tpu_custom_call.1} parent=11 // pred_fallthru
          _
        // Predicated region
        $region25: #{tpu_custom_call.1} parent=11 // pred_check
          %p182 = pneg %p122
        $region26: #{tpu_custom_call.1} parent=11 // pred_check_branch
          %184 = sbr.rel (%p182) target = $region28
        $region27: #{tpu_custom_call.1} parent=11 // pred_region
          _
        $region28: #{tpu_custom_call.1} parent=11 // pred_fallthru
          _
      $region12: #{tpu_custom_call.1} parent=5 // pred_fallthru
        _
      %p185 = scmp.lt.s32.totalorder %s12, 2
      // Predicated region
      $region29: #{tpu_custom_call.1} parent=5 // pred_check
        %p186 = pneg %p185
      $region30: #{tpu_custom_call.1} parent=5 // pred_check_branch
        %188 = sbr.rel (%p186) target = $region32
      $region31: #{tpu_custom_call.1} parent=5 // pred_region
        // Predicated region
        $region33: #{tpu_custom_call.1} parent=31 // pred_check
          %p189 = pneg %p32
        $region34: #{tpu_custom_call.1} parent=31 // pred_check_branch
          %191 = sbr.rel (%p189) target = $region36
        $region35: #{tpu_custom_call.1} parent=31 // pred_region
          %s192 = smul.u32 2, %s12
          %p193 = scmp.lt.s32.totalorder %s192, 3
          %s194 = scalar_select %p193, %s192, 3
          %s195 = smul.addr %s194, 8
          %s196 = scalar_lea.vmem %s0, %s195
          %s197 = smul.u32 2, %s12
        $region36: #{tpu_custom_call.1} parent=31 // pred_fallthru
          _
      $region32: #{tpu_custom_call.1} parent=5 // pred_fallthru
        _
      %p198 = scmp.le.s32.totalorder 1, %s12
      %p199 = scmp.lt.s32.totalorder %s12, 3
      %p200 = pnand %p198, %p199
      %p201 = pneg %p200
      // Predicated region
      $region37: #{tpu_custom_call.1} parent=5 // pred_check
        _
      $region38: #{tpu_custom_call.1} parent=5 // pred_check_branch
        %203 = sbr.rel (%p200) target = $region40
      $region39: #{tpu_custom_call.1} parent=5 // pred_region
        %s204 = ssub.s32 %s12, 1
        // Predicated region
        $region41: #{tpu_custom_call.1} parent=39 // pred_check
          %p205 = pneg %p101
        $region42: #{tpu_custom_call.1} parent=39 // pred_check_branch
          %207 = sbr.rel (%p205) target = $region44
        $region43: #{tpu_custom_call.1} parent=39 // pred_region
          %208 = dma.done [#allocation3], 2048
        $region44: #{tpu_custom_call.1} parent=39 // pred_fallthru
          _
        %s209 = smul.u32 2, %s17
        %p210 = scmp.lt.s32.totalorder %s209, 3
        %s211 = scalar_select %p210, %s209, 3
        %s212 = smul.addr %s211, 8
        %s213 = scalar_lea.vmem %s0, %s212
        %p214 = pneg %p38
        %p215 = pneg %p35
        %p216 = pneg %p59
        %p217 = pneg %p56
        %p218 = pneg %p80
        %p219 = pneg %p77
        %p220 = pneg %p101
        %p221 = pneg %p98
        %p222 = pneg %p122
        %p223 = pneg %p119
        %p224 = pneg %p148
        %p225 = pneg %p145
        %s226 = smul.u32 2, %s17
        %p227 = scmp.lt.s32.totalorder %s226, 3
        %s228 = scalar_select %p227, %s226, 3
        %s229 = smul.addr %s228, 8
        %s230 = scalar_lea.vmem %s5, %s229
        %s231 = smul.u32 2, %s17
        %p232 = scmp.lt.s32.totalorder %s231, 3
        %s233 = scalar_select %p232, %s231, 3
        %s234 = smul.addr %s233, 8
        %s235 = scalar_lea.vmem %s0, %s234
        %s236 = smul.u32 2, %s17
        %s237 = smul.u32 2, %s17
        %p238 = scmp.lt.s32.totalorder %s237, 3
        %s239 = scalar_select %p238, %s237, 3
        %s240 = smul.addr %s239, 8
        %s241 = scalar_lea.vmem %s5, %s240
        %s242 = smul.u32 2, %s17
        %v243 = vld [vmem:[%s235] sm:$0xff]
        %v244 = vld [vmem:[%s235 + $0x8] sm:$0xff]
        %v245 = vld [vmem:[%s1] sm:$0xff]
        %v246 = vld [vmem:[%s1 + $0x8] sm:$0x3f]
        %v247 = vld [vmem:[%s2] sm:$0x1]
        %v249 = vlaneseq
        %v250 = vshrl.u32 %v249, 7
        %v251 = vsub.s32 0, %v250
        %v252 = vrot.slane %v247, %v251
        %vm254 = vcmask 113664
        %v256 = vsel %vm254, %v243, 0
        %v259 = vsel %vm254, %v244, 0
        %vm261 = vcmask 1045504
        %v263 = vsel %vm261, %v246, 0
        %265 = vmatprep.subr.mxu0 0.0
        %266 = vmatpush1.msra.mxu0 %v245
        %267 = vmatprep.subr.mxu0 0.0
        %268 = vmatpush1.msra.mxu0 %v263
        %269 = vmatprep.subr.mxu0 0.0
        %270 = vmatpush1.msra.mxu0 0.0
        %271 = vmatprep.subr.mxu0 0.0
        %272 = vmatpush1.msra.mxu0 0.0
        %273 = vmatprep.subr.mxu0 0.0
        %274 = vmatpush1.msra.mxu0 0.0
        %275 = vmatprep.subr.mxu0 0.0
        %276 = vmatpush1.msra.mxu0 0.0
        %277 = vmatprep.subr.mxu0 0.0
        %278 = vmatpush1.msra.mxu0 0.0
        %279 = vmatprep.subr.mxu0 0.0
        %280 = vmatpush1.msra.mxu0 0.0
        %281 = vmatprep.subr.mxu0 0.0
        %282 = vmatpush1.msra.mxu0 0.0
        %283 = vmatprep.subr.mxu0 0.0
        %284 = vmatpush1.msra.mxu0 0.0
        %285 = vmatprep.subr.mxu0 0.0
        %286 = vmatpush1.msra.mxu0 0.0
        %287 = vmatprep.subr.mxu0 0.0
        %288 = vmatpush1.msra.mxu0 0.0
        %289 = vmatprep.subr.mxu0 0.0
        %290 = vmatpush1.msra.mxu0 0.0
        %291 = vmatprep.subr.mxu0 0.0
        %292 = vmatpush1.msra.mxu0 0.0
        %293 = vmatprep.subr.mxu0 0.0
        %294 = vmatpush1.msra.mxu0 0.0
        %295 = vmatprep.subr.mxu0 0.0
        %296 = vmatpush1.msra.mxu0 0.0
        %297 = vmatprep.subr.mxu0 0.0
        %298 = vmatpush1.msra.mxu0 0.0
        %299 = vmatprep.subr.mxu0 0.0
        %300 = vmatpush1.msra.mxu0 0.0
        %301 = vmatprep.subr.mxu0 0.0
        %302 = vmatpush1.msra.mxu0 0.0
        %303 = vmatprep.subr.mxu0 0.0
        %304 = vmatpush1.msra.mxu0 0.0
        %305 = vmatprep.subr.mxu0 0.0
        %306 = vmatpush1.msra.mxu0 0.0
        %307 = vmatprep.subr.mxu0 0.0
        %308 = vmatpush1.msra.mxu0 0.0
        %309 = vmatprep.subr.mxu0 0.0
        %310 = vmatpush1.msra.mxu0 0.0
        %311 = vmatprep.subr.mxu0 0.0
        %312 = vmatpush1.msra.mxu0 0.0
        %313 = vmatprep.subr.mxu0 0.0
        %314 = vmatpush1.msra.mxu0 0.0
        %315 = vmatprep.subr.mxu0 0.0
        %316 = vmatpush1.msra.mxu0 0.0
        %317 = vmatprep.subr.mxu0 0.0
        %318 = vmatpush1.msra.mxu0 0.0
        %319 = vmatprep.subr.mxu0 0.0
        %320 = vmatpush1.msra.mxu0 0.0
        %321 = vmatprep.subr.mxu0 0.0
        %322 = vmatpush1.msra.mxu0 0.0
        %323 = vmatprep.subr.mxu0 0.0
        %324 = vmatpush1.msra.mxu0 0.0
        %325 = vmatprep.subr.mxu0 0.0
        %326 = vmatpush1.msra.mxu0 0.0
        %327 = vmatprep.subr.mxu0 0.0
        %328 = vmatpush1.msra.mxu0 0.0
        %329 = vmatprep.mubr.f32.mxu0 0.0
        %330 = vmatmul.mubr.f32.gmra.mrb[0].mxu0 %v256
        %v331 = vpop.f32.mrb[0].mxu0
        %v332 = vadd.f32 %v252, %v331
        %v333 = vpop.f32.mrb[0].mxu0
        %334 = vmatprep.mubr.f32.mxu0 0.0
        %335 = vmatmul.mubr.f32.gmra.mrb[0].mxu0 %v259
        %v336 = vpop.f32.mrb[0].mxu0
        %v337 = vadd.f32 %v252, %v336
        %v338 = vpop.f32.mrb[0].mxu0
        %339 = vdwg.mxu0
        %v340 = vmax.f32 %v332, 0.0
        %v341 = vmax.f32 %v337, 0.0
        %v342 = vld [vmem:[#allocation2] sm:$0xff]
        %v343 = vld [vmem:[#allocation2 + $0x8] sm:$0xff]
        %v344 = vld [vmem:[#allocation2 + $0x10] sm:$0xff]
        %v345 = vld [vmem:[#allocation2 + $0x18] sm:$0xff]
        %v346 = vld [vmem:[#allocation2 + $0x20] sm:$0xff]
        %v347 = vld [vmem:[#allocation2 + $0x28] sm:$0xff]
        %v348 = vld [vmem:[#allocation2 + $0x30] sm:$0xff]
        %v349 = vld [vmem:[#allocation2 + $0x38] sm:$0xff]
        %v350 = vld [vmem:[#allocation2 + $0x40] sm:$0xff]
        %v351 = vld [vmem:[#allocation2 + $0x48] sm:$0xff]
        %v352 = vld [vmem:[#allocation2 + $0x50] sm:$0xff]
        %v353 = vld [vmem:[#allocation2 + $0x58] sm:$0xff]
        %v354 = vld [vmem:[#allocation2 + $0x60] sm:$0xff]
        %v355 = vld [vmem:[#allocation2 + $0x68] sm:$0xff]
        %v356 = vld [vmem:[#allocation2 + $0x70] sm:$0xff]
        %v357 = vld [vmem:[#allocation2 + $0x78] sm:$0xff]
        %v358 = vld [vmem:[%s4] sm:$0x1]
        %v360 = vlaneseq
        %v361 = vshrl.u32 %v360, 7
        %v362 = vsub.s32 0, %v361
        %v363 = vrot.slane %v358, %v362
        %365 = vmatprep.subr.mxu0 0.0
        %366 = vmatpush1.msra.mxu0 %v342
        %367 = vmatprep.subr.mxu0 0.0
        %368 = vmatpush1.msra.mxu0 %v343
        %369 = vmatprep.subr.mxu0 0.0
        %370 = vmatpush1.msra.mxu0 %v344
        %371 = vmatprep.subr.mxu0 0.0
        %372 = vmatpush1.msra.mxu0 %v345
        %373 = vmatprep.subr.mxu0 0.0
        %374 = vmatpush1.msra.mxu0 %v346
        %375 = vmatprep.subr.mxu0 0.0
        %376 = vmatpush1.msra.mxu0 %v347
        %377 = vmatprep.subr.mxu0 0.0
        %378 = vmatpush1.msra.mxu0 %v348
        %379 = vmatprep.subr.mxu0 0.0
        %380 = vmatpush1.msra.mxu0 %v349
        %381 = vmatprep.subr.mxu0 0.0
        %382 = vmatpush1.msra.mxu0 %v350
        %383 = vmatprep.subr.mxu0 0.0
        %384 = vmatpush1.msra.mxu0 %v351
        %385 = vmatprep.subr.mxu0 0.0
        %386 = vmatpush1.msra.mxu0 %v352
        %387 = vmatprep.subr.mxu0 0.0
        %388 = vmatpush1.msra.mxu0 %v353
        %389 = vmatprep.subr.mxu0 0.0
        %390 = vmatpush1.msra.mxu0 %v354
        %391 = vmatprep.subr.mxu0 0.0
        %392 = vmatpush1.msra.mxu0 %v355
        %393 = vmatprep.subr.mxu0 0.0
        %394 = vmatpush1.msra.mxu0 %v356
        %395 = vmatprep.subr.mxu0 0.0
        %396 = vmatpush1.msra.mxu0 %v357
        %397 = vmatprep.subr.mxu0 0.0
        %398 = vmatpush1.msra.mxu0 0.0
        %399 = vmatprep.subr.mxu0 0.0
        %400 = vmatpush1.msra.mxu0 0.0
        %401 = vmatprep.subr.mxu0 0.0
        %402 = vmatpush1.msra.mxu0 0.0
        %403 = vmatprep.subr.mxu0 0.0
        %404 = vmatpush1.msra.mxu0 0.0
        %405 = vmatprep.subr.mxu0 0.0
        %406 = vmatpush1.msra.mxu0 0.0
        %407 = vmatprep.subr.mxu0 0.0
        %408 = vmatpush1.msra.mxu0 0.0
        %409 = vmatprep.subr.mxu0 0.0
        %410 = vmatpush1.msra.mxu0 0.0
        %411 = vmatprep.subr.mxu0 0.0
        %412 = vmatpush1.msra.mxu0 0.0
        %413 = vmatprep.subr.mxu0 0.0
        %414 = vmatpush1.msra.mxu0 0.0
        %415 = vmatprep.subr.mxu0 0.0
        %416 = vmatpush1.msra.mxu0 0.0
        %417 = vmatprep.subr.mxu0 0.0
        %418 = vmatpush1.msra.mxu0 0.0
        %419 = vmatprep.subr.mxu0 0.0
        %420 = vmatpush1.msra.mxu0 0.0
        %421 = vmatprep.subr.mxu0 0.0
        %422 = vmatpush1.msra.mxu0 0.0
        %423 = vmatprep.subr.mxu0 0.0
        %424 = vmatpush1.msra.mxu0 0.0
        %425 = vmatprep.subr.mxu0 0.0
        %426 = vmatpush1.msra.mxu0 0.0
        %427 = vmatprep.subr.mxu0 0.0
        %428 = vmatpush1.msra.mxu0 0.0
        %429 = vmatprep.mubr.f32.mxu0 0.0
        %430 = vmatmul.mubr.f32.gmra.mrb[0].mxu0 %v340
        %v431 = vpop.f32.mrb[0].mxu0
        %v432 = vadd.f32 %v363, %v431
        %v433 = vpop.f32.mrb[0].mxu0
        %434 = vmatprep.mubr.f32.mxu0 0.0
        %435 = vmatmul.mubr.f32.gmra.mrb[0].mxu0 %v341
        %v436 = vpop.f32.mrb[0].mxu0
        %v437 = vadd.f32 %v363, %v436
        %v438 = vpop.f32.mrb[0].mxu0
        %439 = vdwg.mxu0
        %vm440 = vcmask 31744
        %441 = vst.msk [vmem:[%s241] sm:$0xff] %vm440, %v432
        %442 = vst.msk [vmem:[%s241 + $0x8] sm:$0xff] %vm440, %v437
        %s443 = smul.u32 2, %s17
        %p444 = scmp.lt.s32.totalorder %s443, 3
        %s445 = scalar_select %p444, %s443, 3
        %s446 = smul.addr %s445, 8
        %s447 = scalar_lea.vmem %s5, %s446
        // Predicated region
        $region45: #{tpu_custom_call.1} parent=39 // pred_check
          %p448 = pneg %p145
        $region46: #{tpu_custom_call.1} parent=39 // pred_check_branch
          %450 = sbr.rel (%p448) target = $region48
        $region47: #{tpu_custom_call.1} parent=39 // pred_region
          %s451 = smul.u32 2, %s17
        $region48: #{tpu_custom_call.1} parent=39 // pred_fallthru
          _
      $region40: #{tpu_custom_call.1} parent=5 // pred_fallthru
        _
      %p452 = scmp.le.s32.totalorder 2, %s12
      // Predicated region
      $region49: #{tpu_custom_call.1} parent=5 // pred_check
        %p453 = pneg %p452
      $region50: #{tpu_custom_call.1} parent=5 // pred_check_branch
        %455 = sbr.rel (%p453) target = $region52
      $region51: #{tpu_custom_call.1} parent=5 // pred_region
        %s456 = ssub.s32 %s12, 2
        // Predicated region
        $region53: #{tpu_custom_call.1} parent=51 // pred_check
          %p457 = pneg %p151
        $region54: #{tpu_custom_call.1} parent=51 // pred_check_branch
          %459 = sbr.rel (%p457) target = $region56
        $region55: #{tpu_custom_call.1} parent=51 // pred_region
          %s460 = smul.u32 2, %s18
          %p461 = scmp.lt.s32.totalorder %s460, 3
          %s462 = scalar_select %p461, %s460, 3
          %s463 = smul.addr %s462, 8
          %s464 = scalar_lea.vmem %s5, %s463
        $region56: #{tpu_custom_call.1} parent=51 // pred_fallthru
          _
      $region52: #{tpu_custom_call.1} parent=5 // pred_fallthru
        _
    $region6: #{tpu_custom_call.1} parent=1 // loop_footer
      %s16 = sadd.s32 1, %s12
    $region7: #{tpu_custom_call.1} parent=1 // loop_footer_branch
      %11 = sbr.rel target = $region3
    $region8: #{tpu_custom_call.1} parent=1 // loop_exit
      _
    %465 = vsyncpa [#allocation3], 1
    %s466 = scalar_lea.sflag [#allocation3], 1
    %467 = vsyncpa %s466, 1

</llo_original>
